<compile_context>
chip_gen: v7x
topology: tpu7x:2x2x1
jax: 0.10.0
libtpu: 0.0.40
codegen_flags: <defaults>
</compile_context>

<pallas_src>
import functools

import jax
import jax.numpy as jnp
from jax.experimental import pallas as pl
from jax.experimental.pallas import tpu as pltpu

IN_DIM = 561
H1 = 256
H2 = 128
OUT_DIM = 6
OUT_PAD = 128          # lane-dense output; columns 6..127 are zero

TB_DEFAULT = 1024      # max batch-tile rows (multiple of 256 for the 256x256 MXU)


def _round_up(x, m):
    return (x + m - 1) // m * m


def _mlp_kernel(x_ref, w1_ref, b1_ref, w2_ref, b2_ref, w3_ref, b3_ref, o_ref):
    # Cast the activation tile to the weight dtype (bf16 by default) right at
    # the MXU input; accumulation / bias-add / ReLU stay in fp32.
    x = x_ref[...].astype(w1_ref.dtype)

    # Layer 1: Linear(561 -> 256) + ReLU.  K = 561 is left ragged; Mosaic pads
    # the contraction dim internally with no extra HBM traffic.
    h1 = jnp.dot(x, w1_ref[...], preferred_element_type=jnp.float32)
    h1 = jnp.maximum(h1 + b1_ref[...], 0.0)

    # Layer 2: Linear(256 -> 128) + ReLU
    h2 = jnp.dot(h1.astype(w2_ref.dtype), w2_ref[...],
                 preferred_element_type=jnp.float32)
    h2 = jnp.maximum(h2 + b2_ref[...], 0.0)

    # Layer 3: Linear(128 -> 128 padded); columns 6..127 of w3/b3 are zero.
    out = jnp.dot(h2.astype(w3_ref.dtype), w3_ref[...],
                  preferred_element_type=jnp.float32)
    o_ref[...] = (out + b3_ref[...]).astype(o_ref.dtype)


def pad_params(params, compute_dtype=jnp.bfloat16):
    """Cast weights to the compute dtype and zero-pad the final layer to a
    lane-dense 128-wide output. Do this ONCE per model."""
    w1, b1, w2, b2, w3, b3 = params
    w1p = w1.astype(compute_dtype)                              # (561, 256)
    w2p = w2.astype(compute_dtype)                              # (256, 128)
    w3p = jnp.zeros((H2, OUT_PAD), compute_dtype).at[:, :OUT_DIM].set(
        w3.astype(compute_dtype))                               # (128, 128)
    # Biases stay fp32 (added to the fp32 accumulator).
    b1p = b1.astype(jnp.float32).reshape(1, H1)
    b2p = b2.astype(jnp.float32).reshape(1, H2)
    b3p = jnp.zeros((1, OUT_PAD), jnp.float32).at[:, :OUT_DIM].set(
        b3.astype(jnp.float32).reshape(1, OUT_DIM))
    return (w1p, b1p, w2p, b2p, w3p, b3p)


def _pick_tile(B, tile_b):
    """Batch tile: single full-extent block for small B; otherwise >= 2 blocks
    (so ("parallel",) splits across both v7x TensorCores), multiples of 256."""
    if B <= 256:
        return B                     # block == full batch dim (always legal)
    tb = min(tile_b, _round_up(pl.cdiv(B, 2), 256))
    return max(256, tb)


@functools.partial(jax.jit, static_argnames=("tile_b",))
def har_model_forward(x, padded_params, tile_b=TB_DEFAULT):
    """x: [B, 561] (fp32 or bf16) -> [B, 6] float32. padded_params from pad_params()."""
    w1, b1, w2, b2, w3, b3 = padded_params
    B = x.shape[0]

    tb = _pick_tile(B, tile_b)
    grid = (pl.cdiv(B, tb),)         # last block may be partial: no batch padding

    out_dtype = w1.dtype             # bf16 output halves writeback on the bf16 path
    xbytes = jnp.dtype(x.dtype).itemsize
    wbytes = jnp.dtype(w1.dtype).itemsize
    obytes = jnp.dtype(out_dtype).itemsize
    cost = pl.CostEstimate(
        flops=2 * B * (IN_DIM * H1 + H1 * H2 + H2 * OUT_PAD),
        transcendentals=0,
        bytes_accessed=B * IN_DIM * xbytes
        + (IN_DIM * H1 + H1 * H2 + H2 * OUT_PAD) * wbytes
        + (H1 + H2 + OUT_PAD) * 4
        + B * OUT_PAD * obytes,
    )

    out_padded = pl.pallas_call(
        _mlp_kernel,
        out_shape=jax.ShapeDtypeStruct((B, OUT_PAD), out_dtype),
        grid=grid,
        in_specs=[
            # batch-tiled activations; last dim (561) == full array dim.
            pl.BlockSpec((tb, IN_DIM), lambda i: (i, 0)),
            # weights/biases: constant index_map -> VMEM-resident across the grid.
            pl.BlockSpec((IN_DIM, H1), lambda i: (0, 0)),
            pl.BlockSpec((1, H1), lambda i: (0, 0)),
            pl.BlockSpec((H1, H2), lambda i: (0, 0)),
            pl.BlockSpec((1, H2), lambda i: (0, 0)),
            pl.BlockSpec((H2, OUT_PAD), lambda i: (0, 0)),
            pl.BlockSpec((1, OUT_PAD), lambda i: (0, 0)),
        ],
        out_specs=pl.BlockSpec((tb, OUT_PAD), lambda i: (i, 0)),
        compiler_params=pltpu.CompilerParams(
            dimension_semantics=("parallel",),   # batch split across TCs on v7x
            vmem_limit_bytes=32 << 20,           # safe within v7x's 64 MiB VMEM
        ),
        cost_estimate=cost,
    )(x, w1, b1, w2, b2, w3, b3)

    return out_padded[:, :OUT_DIM].astype(jnp.float32)


def init_params(key):
    """Deterministic init mimicking PyTorch nn.Linear (U(-1/sqrt(fan_in), +))."""
    ks = jax.random.split(key, 6)

    def linear(kw, kb, fan_in, fan_out):
        bound = 1.0 / jnp.sqrt(fan_in)
        w = jax.random.uniform(kw, (fan_in, fan_out), jnp.float32, -bound, bound)
        b = jax.random.uniform(kb, (1, fan_out), jnp.float32, -bound, bound)
        return w, b

    w1, b1 = linear(ks[0], ks[1], IN_DIM, H1)
    w2, b2 = linear(ks[2], ks[3], H1, H2)
    w3, b3 = linear(ks[4], ks[5], H2, OUT_DIM)
    return (w1, b1, w2, b2, w3, b3)


def reference_forward(x, params):
    w1, b1, w2, b2, w3, b3 = params
    h1 = jnp.maximum(x @ w1 + b1, 0.0)
    h2 = jnp.maximum(h1 @ w2 + b2, 0.0)
    return h2 @ w3 + b3


if __name__ == "__main__":
    key = jax.random.PRNGKey(0)
    kx, kp = jax.random.split(key)

    B = 8
    x = jax.random.normal(kx, (B, IN_DIM), jnp.float32)
    params = init_params(kp)
    ref = reference_forward(x, params)

    # Default path: bf16 weights + in-kernel bf16 cast of x, fp32 accumulation,
    # bf16 output (cast back to fp32 in the wrapper).
    padded_bf16 = pad_params(params)                      # bf16 is the default
    out_bf16 = jax.block_until_ready(har_model_forward(x, padded_bf16))
    assert out_bf16.shape == (B, OUT_DIM)
    assert jnp.allclose(out_bf16, ref, atol=1e-1, rtol=1e-1)

    # fp32 parity path (tolerance-level agreement with the XLA reference).
    padded_f32 = pad_params(params, compute_dtype=jnp.float32)
    out_f32 = jax.block_until_ready(har_model_forward(x, padded_f32))
    assert out_f32.shape == (B, OUT_DIM)
    assert jnp.allclose(out_f32, ref, atol=1e-4, rtol=1e-4)

    # Uneven larger batch: 2-step grid with a partial last block, no host-side
    # padding or copying of x.
    B2 = 300
    x2 = jax.random.normal(kx, (B2, IN_DIM), jnp.float32)
    out2 = jax.block_until_ready(har_model_forward(x2, padded_f32))
    ref2 = reference_forward(x2, params)
    assert out2.shape == (B2, OUT_DIM)
    assert jnp.allclose(out2, ref2, atol=1e-4, rtol=1e-4)

    print("KERNEL_OK")
</pallas_src>

<mosaic_0001>
module attributes {stable_mosaic.version = 11 : i64} {
  func.func @_mlp_kernel(%arg0: i32, %arg1: memref<8x561xf32, #tpu.memory_space<vmem>>, %arg2: memref<561x256xbf16, #tpu.memory_space<vmem>>, %arg3: memref<1x256xf32, #tpu.memory_space<vmem>>, %arg4: memref<256x128xbf16, #tpu.memory_space<vmem>>, %arg5: memref<1x128xf32, #tpu.memory_space<vmem>>, %arg6: memref<128x128xbf16, #tpu.memory_space<vmem>>, %arg7: memref<1x128xf32, #tpu.memory_space<vmem>>, %arg8: memref<8x128xbf16, #tpu.memory_space<vmem>>) attributes {dimension_semantics = [#tpu.dimension_semantics<parallel>], iteration_bounds = array<i64: 1>, scalar_prefetch = 0 : i64, scratch_operands = 0 : i64, tpu.core_type = #tpu.core_type<tc>, window_params = [{transform_indices = @transform_0, window_bounds = array<i64: 8, 561>}, {pipeline_mode = #tpu.pipeline_mode<synchronous>, transform_indices = @transform_1, window_bounds = array<i64: 561, 256>}, {pipeline_mode = #tpu.pipeline_mode<synchronous>, transform_indices = @transform_2, window_bounds = array<i64: 1, 256>}, {pipeline_mode = #tpu.pipeline_mode<synchronous>, transform_indices = @transform_3, window_bounds = array<i64: 256, 128>}, {pipeline_mode = #tpu.pipeline_mode<synchronous>, transform_indices = @transform_4, window_bounds = array<i64: 1, 128>}, {pipeline_mode = #tpu.pipeline_mode<synchronous>, transform_indices = @transform_5, window_bounds = array<i64: 128, 128>}, {pipeline_mode = #tpu.pipeline_mode<synchronous>, transform_indices = @transform_6, window_bounds = array<i64: 1, 128>}, {transform_indices = @transform_7, window_bounds = array<i64: 8, 128>}]} {
    %c0 = arith.constant 0 : index
    %c0_0 = arith.constant 0 : index
    %0 = vector.load %arg1[%c0, %c0_0] : memref<8x561xf32, #tpu.memory_space<vmem>>, vector<8x561xf32>
    %1 = arith.truncf %0 : vector<8x561xf32> to vector<8x561xbf16>
    %c0_1 = arith.constant 0 : index
    %c0_2 = arith.constant 0 : index
    %2 = vector.load %arg2[%c0_1, %c0_2] : memref<561x256xbf16, #tpu.memory_space<vmem>>, vector<561x256xbf16>
    %cst = arith.constant dense<0.000000e+00> : vector<8x256xf32>
    %3 = tpu.matmul %1, %2, %cst {dimension_numbers = #tpu.dot_dimension_numbers<[1], [0], [0], [1], [0, 0, 1, 1], [], []>} : vector<8x561xbf16>, vector<561x256xbf16>, vector<8x256xf32> -> vector<8x256xf32>
    %c0_3 = arith.constant 0 : index
    %c0_4 = arith.constant 0 : index
    %4 = vector.load %arg3[%c0_3, %c0_4] : memref<1x256xf32, #tpu.memory_space<vmem>>, vector<1x256xf32>
    %5 = vector.broadcast %4 : vector<1x256xf32> to vector<8x256xf32>
    %6 = arith.addf %3, %5 : vector<8x256xf32>
    %cst_5 = arith.constant 0.000000e+00 : f32
    %7 = vector.broadcast %cst_5 : f32 to vector<8x256xf32>
    %8 = arith.maximumf %6, %7 : vector<8x256xf32>
    %9 = arith.truncf %8 : vector<8x256xf32> to vector<8x256xbf16>
    %c0_6 = arith.constant 0 : index
    %c0_7 = arith.constant 0 : index
    %10 = vector.load %arg4[%c0_6, %c0_7] : memref<256x128xbf16, #tpu.memory_space<vmem>>, vector<256x128xbf16>
    %cst_8 = arith.constant dense<0.000000e+00> : vector<8x128xf32>
    %11 = tpu.matmul %9, %10, %cst_8 {dimension_numbers = #tpu.dot_dimension_numbers<[1], [0], [0], [1], [0, 0, 1, 1], [], []>} : vector<8x256xbf16>, vector<256x128xbf16>, vector<8x128xf32> -> vector<8x128xf32>
    %c0_9 = arith.constant 0 : index
    %c0_10 = arith.constant 0 : index
    %12 = vector.load %arg5[%c0_9, %c0_10] : memref<1x128xf32, #tpu.memory_space<vmem>>, vector<1x128xf32>
    %13 = vector.broadcast %12 : vector<1x128xf32> to vector<8x128xf32>
    %14 = arith.addf %11, %13 : vector<8x128xf32>
    %cst_11 = arith.constant 0.000000e+00 : f32
    %15 = vector.broadcast %cst_11 : f32 to vector<8x128xf32>
    %16 = arith.maximumf %14, %15 : vector<8x128xf32>
    %17 = arith.truncf %16 : vector<8x128xf32> to vector<8x128xbf16>
    %c0_12 = arith.constant 0 : index
    %c0_13 = arith.constant 0 : index
    %18 = vector.load %arg6[%c0_12, %c0_13] : memref<128x128xbf16, #tpu.memory_space<vmem>>, vector<128x128xbf16>
    %cst_14 = arith.constant dense<0.000000e+00> : vector<8x128xf32>
    %19 = tpu.matmul %17, %18, %cst_14 {dimension_numbers = #tpu.dot_dimension_numbers<[1], [0], [0], [1], [0, 0, 1, 1], [], []>} : vector<8x128xbf16>, vector<128x128xbf16>, vector<8x128xf32> -> vector<8x128xf32>
    %c0_15 = arith.constant 0 : index
    %c0_16 = arith.constant 0 : index
    %20 = vector.load %arg7[%c0_15, %c0_16] : memref<1x128xf32, #tpu.memory_space<vmem>>, vector<1x128xf32>
    %21 = vector.broadcast %20 : vector<1x128xf32> to vector<8x128xf32>
    %22 = arith.addf %19, %21 : vector<8x128xf32>
    %23 = arith.truncf %22 : vector<8x128xf32> to vector<8x128xbf16>
    %c0_17 = arith.constant 0 : index
    %c0_18 = arith.constant 0 : index
    %24 = vector.load %arg8[%c0_17, %c0_18] : memref<8x128xbf16, #tpu.memory_space<vmem>>, vector<8x128xbf16>
    tpu.vector_store %arg8[%c0_17, %c0_18], %23 {strides = array<i32>} : memref<8x128xbf16, #tpu.memory_space<vmem>>, vector<8x128xbf16>,
    return
  }
  func.func @transform_0(%arg0: i32) -> (i32, i32) {
    %c0_i32 = arith.constant 0 : i32
    %c0_i32_0 = arith.constant 0 : i32
    return %arg0, %c0_i32 : i32, i32
  }
  func.func @transform_1(%arg0: i32) -> (i32, i32) {
    %c0_i32 = arith.constant 0 : i32
    %c0_i32_0 = arith.constant 0 : i32
    %c0_i32_1 = arith.constant 0 : i32
    return %c0_i32, %c0_i32_0 : i32, i32
  }
  func.func @transform_2(%arg0: i32) -> (i32, i32) {
    %c0_i32 = arith.constant 0 : i32
    %c0_i32_0 = arith.constant 0 : i32
    %c0_i32_1 = arith.constant 0 : i32
    return %c0_i32, %c0_i32_0 : i32, i32
  }
  func.func @transform_3(%arg0: i32) -> (i32, i32) {
    %c0_i32 = arith.constant 0 : i32
    %c0_i32_0 = arith.constant 0 : i32
    %c0_i32_1 = arith.constant 0 : i32
    return %c0_i32, %c0_i32_0 : i32, i32
  }
  func.func @transform_4(%arg0: i32) -> (i32, i32) {
    %c0_i32 = arith.constant 0 : i32
    %c0_i32_0 = arith.constant 0 : i32
    %c0_i32_1 = arith.constant 0 : i32
    return %c0_i32, %c0_i32_0 : i32, i32
  }
  func.func @transform_5(%arg0: i32) -> (i32, i32) {
    %c0_i32 = arith.constant 0 : i32
    %c0_i32_0 = arith.constant 0 : i32
    %c0_i32_1 = arith.constant 0 : i32
    return %c0_i32, %c0_i32_0 : i32, i32
  }
  func.func @transform_6(%arg0: i32) -> (i32, i32) {
    %c0_i32 = arith.constant 0 : i32
    %c0_i32_0 = arith.constant 0 : i32
    %c0_i32_1 = arith.constant 0 : i32
    return %c0_i32, %c0_i32_0 : i32, i32
  }
  func.func @transform_7(%arg0: i32) -> (i32, i32) {
    %c0_i32 = arith.constant 0 : i32
    %c0_i32_0 = arith.constant 0 : i32
    return %arg0, %c0_i32 : i32, i32
  }
}

</mosaic_0001>

<llo_original>
// kernel: har_model_forward.1
$region0: #{har_model_forward.1}
  #allocation0 [shape = 'u32[]', space=smem, size = 0x4, offset = 0x4, fixed_abs, tag = 'smem constant byte address 0x4 - core index']
  #allocation1 [shape = 'u32[144,128]{1,0:T(1,128)}', space=vmem, size = 0x12000, scoped, tag = 'internal scratch']
  %s0 = inlined_call_operand.hbm [shape: f32[8,561], index: 0, kind: input, shape index: {}]
  %s1 = inlined_call_operand.hbm [shape: bf16[561,256], index: 1, kind: input, shape index: {}]
  %s2 = inlined_call_operand.vmem [shape: f32[1,256], index: 2, kind: input, shape index: {}]
  %s3 = inlined_call_operand.hbm [shape: bf16[256,128], index: 3, kind: input, shape index: {}]
  %s4 = inlined_call_operand.vmem [shape: f32[1,128], index: 4, kind: input, shape index: {}]
  %s5 = inlined_call_operand.hbm [shape: bf16[128,128], index: 5, kind: input, shape index: {}]
  %s6 = inlined_call_operand.vmem [shape: f32[1,128], index: 6, kind: input, shape index: {}]
  %s7 = inlined_call_operand.vmem [shape: bf16[8,128], index: 7, kind: output, shape index: {}]
  %s8 = sld [smem:[#allocation0]]
  $region54: #{har_model_forward.1} parent=0
    _
  %s10 = ssub.s32 1, %s8
  %s11 = scalar_select 0, %s10, %s8
  $region1: #{har_model_forward.1} parent=0
    #allocation2 [shape = 'u8[20480]{0}', space=vmem, size = 0x5000, scoped, tag = 'input window, operand 0, single buffered']
    #allocation3 [shape = 's32[1]{0}', space=sflag, size = 0x4, scoped, tag = 'scoped memory for har_model_forward.1']
    #allocation4 [shape = 'u8[290816]{0}', space=vmem, size = 0x47000, scoped, tag = 'input window, operand 1, single buffered']
    #allocation5 [shape = 's32[1]{0}', space=sflag, size = 0x4, scoped, tag = 'scoped memory for har_model_forward.1']
    #allocation6 [shape = 'u8[65536]{0}', space=vmem, size = 0x10000, scoped, tag = 'input window, operand 3, single buffered']
    #allocation7 [shape = 'u8[32768]{0}', space=vmem, size = 0x8000, scoped, tag = 'input window, operand 5, single buffered']
    #allocation8 [shape = 's32[1]{0}', space=sflag, size = 0x4, scoped, tag = 'scoped memory for har_model_forward.1']
    %12 = vsyncpa [#allocation3], 0
    %13 = vsyncpa [#allocation5], 0
    %14 = vsyncpa [#allocation8], 0
    // Predicated region
    $region2: #{har_model_forward.1} parent=1 // pred_check
      _
    $region3: #{har_model_forward.1} parent=1 // pred_check_branch
      %16 = sbr.rel (0) target = $region5
    $region4: #{har_model_forward.1} parent=1 // pred_region
      %s18 = ssub.s32 640, 640
      %19 = vsyncadd [#allocation3], %s18
      %s21 = sshll.u32 [#allocation2], 4
      %s22 = int_to_ptr.vmem [resolvable:$true] %s21
      %24 = dma.hbm_to_vmem [thread:$0]  %s0, 640, %s22, [#allocation3]
    $region5: #{har_model_forward.1} parent=1 // pred_fallthru
      _
    // Predicated region
    $region6: #{har_model_forward.1} parent=1 // pred_check
      _
    $region7: #{har_model_forward.1} parent=1 // pred_check_branch
      %26 = sbr.rel (0) target = $region9
    $region8: #{har_model_forward.1} parent=1 // pred_region
      %s28 = ssub.s32 9088, 9088
      %29 = vsyncadd [#allocation5], %s28
      %s30 = sshll.u32 [#allocation4], 4
      %s31 = int_to_ptr.vmem [resolvable:$true] %s30
      %36 = dma.hbm_to_vmem [thread:$0]  %s1, 9088, %s31, [#allocation5], 128, 128, 8
    $region9: #{har_model_forward.1} parent=1 // pred_fallthru
      _
    // Predicated region
    $region10: #{har_model_forward.1} parent=1 // pred_check
      _
    $region11: #{har_model_forward.1} parent=1 // pred_check_branch
      %38 = sbr.rel (0) target = $region13
    $region12: #{har_model_forward.1} parent=1 // pred_region
      _
    $region13: #{har_model_forward.1} parent=1 // pred_fallthru
      _
    // Predicated region
    $region14: #{har_model_forward.1} parent=1 // pred_check
      _
    $region15: #{har_model_forward.1} parent=1 // pred_check_branch
      %40 = sbr.rel (0) target = $region17
    $region16: #{har_model_forward.1} parent=1 // pred_region
      %s42 = ssub.s32 2048, 2048
      %43 = vsyncadd [#allocation5], %s42
      %s44 = sshll.u32 [#allocation6], 4
      %s45 = int_to_ptr.vmem [resolvable:$true] %s44
      %50 = dma.hbm_to_vmem [thread:$0]  %s3, 2048, %s45, [#allocation5], 64, 64, 4
    $region17: #{har_model_forward.1} parent=1 // pred_fallthru
      _
    // Predicated region
    $region18: #{har_model_forward.1} parent=1 // pred_check
      _
    $region19: #{har_model_forward.1} parent=1 // pred_check_branch
      %52 = sbr.rel (0) target = $region21
    $region20: #{har_model_forward.1} parent=1 // pred_region
      _
    $region21: #{har_model_forward.1} parent=1 // pred_fallthru
      _
    // Predicated region
    $region22: #{har_model_forward.1} parent=1 // pred_check
      _
    $region23: #{har_model_forward.1} parent=1 // pred_check_branch
      %54 = sbr.rel (0) target = $region25
    $region24: #{har_model_forward.1} parent=1 // pred_region
      %s56 = ssub.s32 1024, 1024
      %57 = vsyncadd [#allocation8], %s56
      %s58 = sshll.u32 [#allocation7], 4
      %s59 = int_to_ptr.vmem [resolvable:$true] %s58
      %64 = dma.hbm_to_vmem [thread:$0]  %s5, 1024, %s59, [#allocation8], 64, 64, 4
    $region25: #{har_model_forward.1} parent=1 // pred_fallthru
      _
    // Predicated region
    $region26: #{har_model_forward.1} parent=1 // pred_check
      _
    $region27: #{har_model_forward.1} parent=1 // pred_check_branch
      %66 = sbr.rel (0) target = $region29
    $region28: #{har_model_forward.1} parent=1 // pred_region
      _
    $region29: #{har_model_forward.1} parent=1 // pred_fallthru
      _
    // Predicated region
    $region30: #{har_model_forward.1} parent=1 // pred_check
      _
    $region31: #{har_model_forward.1} parent=1 // pred_check_branch
      %68 = sbr.rel (0) target = $region33
    $region32: #{har_model_forward.1} parent=1 // pred_region
      %69 = dma.done [#allocation3], 640
    $region33: #{har_model_forward.1} parent=1 // pred_fallthru
      _
    // Predicated region
    $region34: #{har_model_forward.1} parent=1 // pred_check
      _
    $region35: #{har_model_forward.1} parent=1 // pred_check_branch
      %71 = sbr.rel (0) target = $region37
    $region36: #{har_model_forward.1} parent=1 // pred_region
      %72 = dma.done [#allocation5], 9088
    $region37: #{har_model_forward.1} parent=1 // pred_fallthru
      _
    // Predicated region
    $region38: #{har_model_forward.1} parent=1 // pred_check
      _
    $region39: #{har_model_forward.1} parent=1 // pred_check_branch
      %74 = sbr.rel (0) target = $region41
    $region40: #{har_model_forward.1} parent=1 // pred_region
      %75 = dma.done [#allocation5], 2048
    $region41: #{har_model_forward.1} parent=1 // pred_fallthru
      _
    // Predicated region
    $region42: #{har_model_forward.1} parent=1 // pred_check
      _
    $region43: #{har_model_forward.1} parent=1 // pred_check_branch
      %77 = sbr.rel (0) target = $region45
    $region44: #{har_model_forward.1} parent=1 // pred_region
      %78 = dma.done [#allocation8], 1024
    $region45: #{har_model_forward.1} parent=1 // pred_fallthru
      _
    %v80 = vld [vmem:[#allocation2] sm:$0xff]
    %v81 = vld [vmem:[#allocation2 + $0x8] sm:$0xff]
    %v82 = vld [vmem:[#allocation2 + $0x10] sm:$0xff]
    %v83 = vld [vmem:[#allocation2 + $0x18] sm:$0xff]
    %v84 = vld [vmem:[#allocation2 + $0x20] sm:$0xff]
    %v85 = vpack.c.bf16 %v80, %v80
    %v86 = vpack.c.bf16 %v81, %v81
    %v87 = vpack.c.bf16 %v82, %v82
    %v88 = vpack.c.bf16 %v83, %v83
    %v89 = vpack.c.bf16 %v84, %v84
    %v90 = vld [vmem:[#allocation4] sm:$0xff]
    %v91 = vld [vmem:[#allocation4 + $0x8] sm:$0xff]
    %v92 = vld [vmem:[#allocation4 + $0x10] sm:$0xff]
    %v93 = vld [vmem:[#allocation4 + $0x18] sm:$0xff]
    %v94 = vld [vmem:[#allocation4 + $0x20] sm:$0xff]
    %v95 = vld [vmem:[#allocation4 + $0x28] sm:$0xff]
    %v96 = vld [vmem:[#allocation4 + $0x30] sm:$0xff]
    %v97 = vld [vmem:[#allocation4 + $0x38] sm:$0xff]
    %v98 = vld [vmem:[#allocation4 + $0x40] sm:$0xff]
    %v99 = vld [vmem:[#allocation4 + $0x48] sm:$0xff]
    %v100 = vld [vmem:[#allocation4 + $0x50] sm:$0xff]
    %v101 = vld [vmem:[#allocation4 + $0x58] sm:$0xff]
    %v102 = vld [vmem:[#allocation4 + $0x60] sm:$0xff]
    %v103 = vld [vmem:[#allocation4 + $0x68] sm:$0xff]
    %v104 = vld [vmem:[#allocation4 + $0x70] sm:$0xff]
    %v105 = vld [vmem:[#allocation4 + $0x78] sm:$0xff]
    %v106 = vld [vmem:[#allocation4 + $0x80] sm:$0xff]
    %v107 = vld [vmem:[#allocation4 + $0x88] sm:$0xff]
    %v108 = vld [vmem:[#allocation4 + $0x90] sm:$0xff]
    %v109 = vld [vmem:[#allocation4 + $0x98] sm:$0xff]
    %v110 = vld [vmem:[#allocation4 + $0xa0] sm:$0xff]
    %v111 = vld [vmem:[#allocation4 + $0xa8] sm:$0xff]
    %v112 = vld [vmem:[#allocation4 + $0xb0] sm:$0xff]
    %v113 = vld [vmem:[#allocation4 + $0xb8] sm:$0xff]
    %v114 = vld [vmem:[#allocation4 + $0xc0] sm:$0xff]
    %v115 = vld [vmem:[#allocation4 + $0xc8] sm:$0xff]
    %v116 = vld [vmem:[#allocation4 + $0xd0] sm:$0xff]
    %v117 = vld [vmem:[#allocation4 + $0xd8] sm:$0xff]
    %v118 = vld [vmem:[#allocation4 + $0xe0] sm:$0xff]
    %v119 = vld [vmem:[#allocation4 + $0xe8] sm:$0xff]
    %v120 = vld [vmem:[#allocation4 + $0xf0] sm:$0xff]
    %v121 = vld [vmem:[#allocation4 + $0xf8] sm:$0xff]
    %v122 = vld [vmem:[#allocation4 + $0x100] sm:$0xff]
    %v123 = vld [vmem:[#allocation4 + $0x108] sm:$0xff]
    %v124 = vld [vmem:[#allocation4 + $0x110] sm:$0xff]
    %v125 = vld [vmem:[#allocation4 + $0x118] sm:$0xff]
    %v126 = vld [vmem:[#allocation4 + $0x120] sm:$0xff]
    %v127 = vld [vmem:[#allocation4 + $0x128] sm:$0xff]
    %v128 = vld [vmem:[#allocation4 + $0x130] sm:$0xff]
    %v129 = vld [vmem:[#allocation4 + $0x138] sm:$0xff]
    %v130 = vld [vmem:[#allocation4 + $0x140] sm:$0xff]
    %v131 = vld [vmem:[#allocation4 + $0x148] sm:$0xff]
    %v132 = vld [vmem:[#allocation4 + $0x150] sm:$0xff]
    %v133 = vld [vmem:[#allocation4 + $0x158] sm:$0xff]
    %v134 = vld [vmem:[#allocation4 + $0x160] sm:$0xff]
    %v135 = vld [vmem:[#allocation4 + $0x168] sm:$0xff]
    %v136 = vld [vmem:[#allocation4 + $0x170] sm:$0xff]
    %v137 = vld [vmem:[#allocation4 + $0x178] sm:$0xff]
    %v138 = vld [vmem:[#allocation4 + $0x180] sm:$0xff]
    %v139 = vld [vmem:[#allocation4 + $0x188] sm:$0xff]
    %v140 = vld [vmem:[#allocation4 + $0x190] sm:$0xff]
    %v141 = vld [vmem:[#allocation4 + $0x198] sm:$0xff]
    %v142 = vld [vmem:[#allocation4 + $0x1a0] sm:$0xff]
    %v143 = vld [vmem:[#allocation4 + $0x1a8] sm:$0xff]
    %v144 = vld [vmem:[#allocation4 + $0x1b0] sm:$0xff]
    %v145 = vld [vmem:[#allocation4 + $0x1b8] sm:$0xff]
    %v146 = vld [vmem:[#allocation4 + $0x1c0] sm:$0xff]
    %v147 = vld [vmem:[#allocation4 + $0x1c8] sm:$0xff]
    %v148 = vld [vmem:[#allocation4 + $0x1d0] sm:$0xff]
    %v149 = vld [vmem:[#allocation4 + $0x1d8] sm:$0xff]
    %v150 = vld [vmem:[#allocation4 + $0x1e0] sm:$0xff]
    %v151 = vld [vmem:[#allocation4 + $0x1e8] sm:$0xff]
    %v152 = vld [vmem:[#allocation4 + $0x1f0] sm:$0xff]
    %v153 = vld [vmem:[#allocation4 + $0x1f8] sm:$0xff]
    %v154 = vld [vmem:[#allocation4 + $0x200] sm:$0xff]
    %v155 = vld [vmem:[#allocation4 + $0x208] sm:$0xff]
    %v156 = vld [vmem:[#allocation4 + $0x210] sm:$0xff]
    %v157 = vld [vmem:[#allocation4 + $0x218] sm:$0xff]
    %v158 = vld [vmem:[#allocation4 + $0x220] sm:$0xff]
    %v159 = vld [vmem:[#allocation4 + $0x228] sm:$0xff]
    %v160 = vld [vmem:[#allocation4 + $0x230] sm:$0x11]
    %v161 = vld [vmem:[%s2] sm:$0x3]
    %v163 = vlaneseq
    %v164 = vshrl.u32 %v163, 7
    %v165 = vsub.s32 0, %v164
    %v166 = vrot.slane %v161, %v165
    %v167 = vlaneseq
    %v168 = vshrl.u32 %v167, 7
    %v169 = vsub.s32 1, %v168
    %v170 = vrot.slane %v161, %v169
    %v244 = vunpack.c.l.b16 %v90
    %v245 = vunpack.c.h.b16 %v90
    %v246 = vunpack.c.l.b16 %v91
    %v247 = vunpack.c.h.b16 %v91
    %v248 = vunpack.c.l.b16 %v92
    %v249 = vunpack.c.h.b16 %v92
    %v250 = vunpack.c.l.b16 %v93
    %v251 = vunpack.c.h.b16 %v93
    %v252 = vunpack.c.l.b16 %v94
    %v253 = vunpack.c.h.b16 %v94
    %v254 = vunpack.c.l.b16 %v95
    %v255 = vunpack.c.h.b16 %v95
    %v256 = vunpack.c.l.b16 %v96
    %v257 = vunpack.c.h.b16 %v96
    %v258 = vunpack.c.l.b16 %v97
    %v259 = vunpack.c.h.b16 %v97
    %v260 = vunpack.c.l.b16 %v98
    %v261 = vunpack.c.h.b16 %v98
    %v262 = vunpack.c.l.b16 %v99
    %v263 = vunpack.c.h.b16 %v99
    %v264 = vunpack.c.l.b16 %v100
    %v265 = vunpack.c.h.b16 %v100
    %v266 = vunpack.c.l.b16 %v101
    %v267 = vunpack.c.h.b16 %v101
    %v268 = vunpack.c.l.b16 %v102
    %v269 = vunpack.c.h.b16 %v102
    %v270 = vunpack.c.l.b16 %v103
    %v271 = vunpack.c.h.b16 %v103
    %v272 = vunpack.c.l.b16 %v104
    %v273 = vunpack.c.h.b16 %v104
    %v274 = vunpack.c.l.b16 %v105
    %v275 = vunpack.c.h.b16 %v105
    %v276 = vunpack.c.l.b16 %v106
    %v277 = vunpack.c.h.b16 %v106
    %v278 = vunpack.c.l.b16 %v107
    %v279 = vunpack.c.h.b16 %v107
    %v280 = vunpack.c.l.b16 %v108
    %v281 = vunpack.c.h.b16 %v108
    %v282 = vunpack.c.l.b16 %v109
    %v283 = vunpack.c.h.b16 %v109
    %v284 = vunpack.c.l.b16 %v110
    %v285 = vunpack.c.h.b16 %v110
    %v286 = vunpack.c.l.b16 %v111
    %v287 = vunpack.c.h.b16 %v111
    %v288 = vunpack.c.l.b16 %v112
    %v289 = vunpack.c.h.b16 %v112
    %v290 = vunpack.c.l.b16 %v113
    %v291 = vunpack.c.h.b16 %v113
    %v292 = vunpack.c.l.b16 %v114
    %v293 = vunpack.c.h.b16 %v114
    %v294 = vunpack.c.l.b16 %v115
    %v295 = vunpack.c.h.b16 %v115
    %v296 = vunpack.c.l.b16 %v116
    %v297 = vunpack.c.h.b16 %v116
    %v298 = vunpack.c.l.b16 %v117
    %v299 = vunpack.c.h.b16 %v117
    %v300 = vunpack.c.l.b16 %v118
    %v301 = vunpack.c.h.b16 %v118
    %v302 = vunpack.c.l.b16 %v119
    %v303 = vunpack.c.h.b16 %v119
    %v304 = vunpack.c.l.b16 %v120
    %v305 = vunpack.c.h.b16 %v120
    %v306 = vunpack.c.l.b16 %v121
    %v307 = vunpack.c.h.b16 %v121
    %v308 = vunpack.c.l.b16 %v122
    %v309 = vunpack.c.h.b16 %v122
    %v310 = vunpack.c.l.b16 %v123
    %v311 = vunpack.c.h.b16 %v123
    %v312 = vunpack.c.l.b16 %v124
    %v313 = vunpack.c.h.b16 %v124
    %v314 = vunpack.c.l.b16 %v125
    %v315 = vunpack.c.h.b16 %v125
    %v316 = vunpack.c.l.b16 %v126
    %v317 = vunpack.c.h.b16 %v126
    %v318 = vunpack.c.l.b16 %v127
    %v319 = vunpack.c.h.b16 %v127
    %v320 = vunpack.c.l.b16 %v128
    %v321 = vunpack.c.h.b16 %v128
    %v322 = vunpack.c.l.b16 %v129
    %v323 = vunpack.c.h.b16 %v129
    %v324 = vunpack.c.l.b16 %v130
    %v325 = vunpack.c.h.b16 %v130
    %v326 = vunpack.c.l.b16 %v131
    %v327 = vunpack.c.h.b16 %v131
    %v328 = vunpack.c.l.b16 %v132
    %v329 = vunpack.c.h.b16 %v132
    %v330 = vunpack.c.l.b16 %v133
    %v331 = vunpack.c.h.b16 %v133
    %v332 = vunpack.c.l.b16 %v134
    %v333 = vunpack.c.h.b16 %v134
    %v334 = vunpack.c.l.b16 %v135
    %v335 = vunpack.c.h.b16 %v135
    %v336 = vunpack.c.l.b16 %v136
    %v337 = vunpack.c.h.b16 %v136
    %v338 = vunpack.c.l.b16 %v137
    %v339 = vunpack.c.h.b16 %v137
    %v340 = vunpack.c.l.b16 %v138
    %v341 = vunpack.c.h.b16 %v138
    %v342 = vunpack.c.l.b16 %v139
    %v343 = vunpack.c.h.b16 %v139
    %v344 = vunpack.c.l.b16 %v140
    %v345 = vunpack.c.h.b16 %v140
    %v346 = vunpack.c.l.b16 %v141
    %v347 = vunpack.c.h.b16 %v141
    %v348 = vunpack.c.l.b16 %v142
    %v349 = vunpack.c.h.b16 %v142
    %v350 = vunpack.c.l.b16 %v143
    %v351 = vunpack.c.h.b16 %v143
    %v352 = vunpack.c.l.b16 %v144
    %v353 = vunpack.c.h.b16 %v144
    %v354 = vunpack.c.l.b16 %v145
    %v355 = vunpack.c.h.b16 %v145
    %v356 = vunpack.c.l.b16 %v146
    %v357 = vunpack.c.h.b16 %v146
    %v358 = vunpack.c.l.b16 %v147
    %v359 = vunpack.c.h.b16 %v147
    %v360 = vunpack.c.l.b16 %v148
    %v361 = vunpack.c.h.b16 %v148
    %v362 = vunpack.c.l.b16 %v149
    %v363 = vunpack.c.h.b16 %v149
    %v364 = vunpack.c.l.b16 %v150
    %v365 = vunpack.c.h.b16 %v150
    %v366 = vunpack.c.l.b16 %v151
    %v367 = vunpack.c.h.b16 %v151
    %v368 = vunpack.c.l.b16 %v152
    %v369 = vunpack.c.h.b16 %v152
    %v370 = vunpack.c.l.b16 %v153
    %v371 = vunpack.c.h.b16 %v153
    %v372 = vunpack.c.l.b16 %v154
    %v373 = vunpack.c.h.b16 %v154
    %v374 = vunpack.c.l.b16 %v155
    %v375 = vunpack.c.h.b16 %v155
    %v376 = vunpack.c.l.b16 %v156
    %v377 = vunpack.c.h.b16 %v156
    %v378 = vunpack.c.l.b16 %v157
    %v379 = vunpack.c.h.b16 %v157
    %v380 = vunpack.c.l.b16 %v158
    %v381 = vunpack.c.h.b16 %v158
    %v382 = vunpack.c.l.b16 %v159
    %v383 = vunpack.c.h.b16 %v159
    %v384 = vunpack.c.l.b16 %v160
    %v385 = vunpack.c.h.b16 %v160
    %v386 = vpack.c.b16 %v246, %v244
    %v387 = vpack.c.b16 %v247, %v245
    %v388 = vpack.c.b16 %v250, %v248
    %v389 = vpack.c.b16 %v251, %v249
    %v390 = vpack.c.b16 %v254, %v252
    %v391 = vpack.c.b16 %v255, %v253
    %v392 = vpack.c.b16 %v258, %v256
    %v393 = vpack.c.b16 %v259, %v257
    %v394 = vpack.c.b16 %v262, %v260
    %v395 = vpack.c.b16 %v263, %v261
    %v396 = vpack.c.b16 %v266, %v264
    %v397 = vpack.c.b16 %v267, %v265
    %v398 = vpack.c.b16 %v270, %v268
    %v399 = vpack.c.b16 %v271, %v269
    %v400 = vpack.c.b16 %v274, %v272
    %v401 = vpack.c.b16 %v275, %v273
    %v402 = vpack.c.b16 %v278, %v276
    %v403 = vpack.c.b16 %v279, %v277
    %v404 = vpack.c.b16 %v282, %v280
    %v405 = vpack.c.b16 %v283, %v281
    %v406 = vpack.c.b16 %v286, %v284
    %v407 = vpack.c.b16 %v287, %v285
    %v408 = vpack.c.b16 %v290, %v288
    %v409 = vpack.c.b16 %v291, %v289
    %v410 = vpack.c.b16 %v294, %v292
    %v411 = vpack.c.b16 %v295, %v293
    %v412 = vpack.c.b16 %v298, %v296
    %v413 = vpack.c.b16 %v299, %v297
    %v414 = vpack.c.b16 %v302, %v300
    %v415 = vpack.c.b16 %v303, %v301
    %v416 = vpack.c.b16 %v306, %v304
    %v417 = vpack.c.b16 %v307, %v305
    %v418 = vpack.c.b16 %v310, %v308
    %v419 = vpack.c.b16 %v311, %v309
    %v420 = vpack.c.b16 %v314, %v312
    %v421 = vpack.c.b16 %v315, %v313
    %v422 = vpack.c.b16 %v318, %v316
    %v423 = vpack.c.b16 %v319, %v317
    %v424 = vpack.c.b16 %v322, %v320
    %v425 = vpack.c.b16 %v323, %v321
    %v426 = vpack.c.b16 %v326, %v324
    %v427 = vpack.c.b16 %v327, %v325
    %v428 = vpack.c.b16 %v330, %v328
    %v429 = vpack.c.b16 %v331, %v329
    %v430 = vpack.c.b16 %v334, %v332
    %v431 = vpack.c.b16 %v335, %v333
    %v432 = vpack.c.b16 %v338, %v336
    %v433 = vpack.c.b16 %v339, %v337
    %v434 = vpack.c.b16 %v342, %v340
    %v435 = vpack.c.b16 %v343, %v341
    %v436 = vpack.c.b16 %v346, %v344
    %v437 = vpack.c.b16 %v347, %v345
    %v438 = vpack.c.b16 %v350, %v348
    %v439 = vpack.c.b16 %v351, %v349
    %v440 = vpack.c.b16 %v354, %v352
    %v441 = vpack.c.b16 %v355, %v353
    %v442 = vpack.c.b16 %v358, %v356
    %v443 = vpack.c.b16 %v359, %v357
    %v444 = vpack.c.b16 %v362, %v360
    %v445 = vpack.c.b16 %v363, %v361
    %v446 = vpack.c.b16 %v366, %v364
    %v447 = vpack.c.b16 %v367, %v365
    %v448 = vpack.c.b16 %v370, %v368
    %v449 = vpack.c.b16 %v371, %v369
    %v450 = vpack.c.b16 %v374, %v372
    %v451 = vpack.c.b16 %v375, %v373
    %v452 = vpack.c.b16 %v378, %v376
    %v453 = vpack.c.b16 %v379, %v377
    %v454 = vpack.c.b16 %v382, %v380
    %v455 = vpack.c.b16 %v383, %v381
    %v456 = vpack.c.b16 %v384, %v384
    %v457 = vpack.c.b16 %v385, %v385
    %vm528 = vcmask 400384
    %v530 = vsel %vm528, %v89, 0
    %vm532 = vcmask 1040384
    %v533 = vsel 0, 4294967295, 65535
    %v534 = vsel %vm532, %v533, 0
    %v536 = vand.u32 %v456, %v534
    %v539 = vand.u32 %v457, %v534
    %541 = vmatprep.subr.bf16.mxu0 %v387
    %542 = vmatpush1.bf16.msra.mxu0 %v386
    %543 = vmatprep.subr.bf16.mxu0 %v389
    %544 = vmatpush1.bf16.msra.mxu0 %v388
    %545 = vmatprep.subr.bf16.mxu0 %v391
    %546 = vmatpush1.bf16.msra.mxu0 %v390
    %547 = vmatprep.subr.bf16.mxu0 %v393
    %548 = vmatpush1.bf16.msra.mxu0 %v392
    %549 = vmatprep.subr.bf16.mxu0 %v395
    %550 = vmatpush1.bf16.msra.mxu0 %v394
    %551 = vmatprep.subr.bf16.mxu0 %v397
    %552 = vmatpush1.bf16.msra.mxu0 %v396
    %553 = vmatprep.subr.bf16.mxu0 %v399
    %554 = vmatpush1.bf16.msra.mxu0 %v398
    %555 = vmatprep.subr.bf16.mxu0 %v401
    %556 = vmatpush1.bf16.msra.mxu0 %v400
    %557 = vmatprep.subr.bf16.mxu0 %v403
    %558 = vmatpush1.bf16.msra.mxu0 %v402
    %559 = vmatprep.subr.bf16.mxu0 %v405
    %560 = vmatpush1.bf16.msra.mxu0 %v404
    %561 = vmatprep.subr.bf16.mxu0 %v407
    %562 = vmatpush1.bf16.msra.mxu0 %v406
    %563 = vmatprep.subr.bf16.mxu0 %v409
    %564 = vmatpush1.bf16.msra.mxu0 %v408
    %565 = vmatprep.subr.bf16.mxu0 %v411
    %566 = vmatpush1.bf16.msra.mxu0 %v410
    %567 = vmatprep.subr.bf16.mxu0 %v413
    %568 = vmatpush1.bf16.msra.mxu0 %v412
    %569 = vmatprep.subr.bf16.mxu0 %v415
    %570 = vmatpush1.bf16.msra.mxu0 %v414
    %571 = vmatprep.subr.bf16.mxu0 %v417
    %572 = vmatpush1.bf16.msra.mxu0 %v416
    %573 = vmatprep.mubr.bf16.mxu0 %v86
    %574 = vmatmul.mubr.bf16.gmra.mrb[0].mxu0 %v85
    %v575 = vpop.f32.mrb[0].mxu0
    %v576 = vadd.f32 %v166, %v575
    %v577 = vpop.f32.mrb[0].mxu0
    %v578 = vadd.f32 %v170, %v577
    %v579 = vpop.f32.mrb[0].mxu0
    %v580 = vpop.f32.mrb[0].mxu0
    %581 = vdwg.mxu0
    %582 = vmatprep.subr.bf16.mxu0 %v419
    %583 = vmatpush1.bf16.msra.mxu0 %v418
    %584 = vmatprep.subr.bf16.mxu0 %v421
    %585 = vmatpush1.bf16.msra.mxu0 %v420
    %586 = vmatprep.subr.bf16.mxu0 %v423
    %587 = vmatpush1.bf16.msra.mxu0 %v422
    %588 = vmatprep.subr.bf16.mxu0 %v425
    %589 = vmatpush1.bf16.msra.mxu0 %v424
    %590 = vmatprep.subr.bf16.mxu0 %v427
    %591 = vmatpush1.bf16.msra.mxu0 %v426
    %592 = vmatprep.subr.bf16.mxu0 %v429
    %593 = vmatpush1.bf16.msra.mxu0 %v428
    %594 = vmatprep.subr.bf16.mxu0 %v431
    %595 = vmatpush1.bf16.msra.mxu0 %v430
    %596 = vmatprep.subr.bf16.mxu0 %v433
    %597 = vmatpush1.bf16.msra.mxu0 %v432
    %598 = vmatprep.subr.bf16.mxu0 %v435
    %599 = vmatpush1.bf16.msra.mxu0 %v434
    %600 = vmatprep.subr.bf16.mxu0 %v437
    %601 = vmatpush1.bf16.msra.mxu0 %v436
    %602 = vmatprep.subr.bf16.mxu0 %v439
    %603 = vmatpush1.bf16.msra.mxu0 %v438
    %604 = vmatprep.subr.bf16.mxu0 %v441
    %605 = vmatpush1.bf16.msra.mxu0 %v440
    %606 = vmatprep.subr.bf16.mxu0 %v443
    %607 = vmatpush1.bf16.msra.mxu0 %v442
    %608 = vmatprep.subr.bf16.mxu0 %v445
    %609 = vmatpush1.bf16.msra.mxu0 %v444
    %610 = vmatprep.subr.bf16.mxu0 %v447
    %611 = vmatpush1.bf16.msra.mxu0 %v446
    %612 = vmatprep.subr.bf16.mxu0 %v449
    %613 = vmatpush1.bf16.msra.mxu0 %v448
    %614 = vmatprep.mubr.bf16.mxu0 %v88
    %615 = vmatmul.mubr.bf16.gmra.mrb[0].mxu0 %v87
    %v616 = vpop.f32.mrb[0].mxu0
    %v617 = vadd.f32 %v576, %v616
    %v618 = vpop.f32.mrb[0].mxu0
    %v619 = vadd.f32 %v578, %v618
    %v620 = vpop.f32.mrb[0].mxu0
    %v621 = vpop.f32.mrb[0].mxu0
    %622 = vdwg.mxu0
    %623 = vmatprep.subr.bf16.mxu0 %v451
    %624 = vmatpush1.bf16.msra.mxu0 %v450
    %625 = vmatprep.subr.bf16.mxu0 %v453
    %626 = vmatpush1.bf16.msra.mxu0 %v452
    %627 = vmatprep.subr.bf16.mxu0 %v455
    %628 = vmatpush1.bf16.msra.mxu0 %v454
    %629 = vmatprep.subr.bf16.mxu0 %v539
    %630 = vmatpush1.bf16.msra.mxu0 %v536
    %631 = vmatprep.subr.bf16.mxu0 0
    %632 = vmatpush1.bf16.msra.mxu0 0
    %633 = vmatprep.subr.bf16.mxu0 0
    %634 = vmatpush1.bf16.msra.mxu0 0
    %635 = vmatprep.subr.bf16.mxu0 0
    %636 = vmatpush1.bf16.msra.mxu0 0
    %637 = vmatprep.subr.bf16.mxu0 0
    %638 = vmatpush1.bf16.msra.mxu0 0
    %639 = vmatprep.subr.bf16.mxu0 0
    %640 = vmatpush1.bf16.msra.mxu0 0
    %641 = vmatprep.subr.bf16.mxu0 0
    %642 = vmatpush1.bf16.msra.mxu0 0
    %643 = vmatprep.subr.bf16.mxu0 0
    %644 = vmatpush1.bf16.msra.mxu0 0
    %645 = vmatprep.subr.bf16.mxu0 0
    %646 = vmatpush1.bf16.msra.mxu0 0
    %647 = vmatprep.subr.bf16.mxu0 0
    %648 = vmatpush1.bf16.msra.mxu0 0
    %649 = vmatprep.subr.bf16.mxu0 0
    %650 = vmatpush1.bf16.msra.mxu0 0
    %651 = vmatprep.subr.bf16.mxu0 0
    %652 = vmatpush1.bf16.msra.mxu0 0
    %653 = vmatprep.subr.bf16.mxu0 0
    %654 = vmatpush1.bf16.msra.mxu0 0
    %655 = vmatprep.mubr.bf16.mxu0 0
    %656 = vmatmul.mubr.bf16.gmra.mrb[0].mxu0 %v530
    %v657 = vpop.f32.mrb[0].mxu0
    %v658 = vadd.f32 %v617, %v657
    %v659 = vpop.f32.mrb[0].mxu0
    %v660 = vadd.f32 %v619, %v659
    %v661 = vpop.f32.mrb[0].mxu0
    %v662 = vpop.f32.mrb[0].mxu0
    %663 = vdwg.mxu0
    %v664 = vmax.f32 %v658, 0.0
    %v665 = vmax.f32 %v660, 0.0
    %v666 = vpack.c.bf16 %v664, %v664
    %v667 = vpack.c.bf16 %v665, %v665
    %v668 = vld [vmem:[#allocation6] sm:$0xf]
    %v669 = vld [vmem:[#allocation6 + $0x4] sm:$0xf]
    %v670 = vld [vmem:[#allocation6 + $0x8] sm:$0xf]
    %v671 = vld [vmem:[#allocation6 + $0xc] sm:$0xf]
    %v672 = vld [vmem:[#allocation6 + $0x10] sm:$0xf]
    %v673 = vld [vmem:[#allocation6 + $0x14] sm:$0xf]
    %v674 = vld [vmem:[#allocation6 + $0x18] sm:$0xf]
    %v675 = vld [vmem:[#allocation6 + $0x1c] sm:$0xf]
    %v676 = vld [vmem:[#allocation6 + $0x20] sm:$0xf]
    %v677 = vld [vmem:[#allocation6 + $0x24] sm:$0xf]
    %v678 = vld [vmem:[#allocation6 + $0x28] sm:$0xf]
    %v679 = vld [vmem:[#allocation6 + $0x2c] sm:$0xf]
    %v680 = vld [vmem:[#allocation6 + $0x30] sm:$0xf]
    %v681 = vld [vmem:[#allocation6 + $0x34] sm:$0xf]
    %v682 = vld [vmem:[#allocation6 + $0x38] sm:$0xf]
    %v683 = vld [vmem:[#allocation6 + $0x3c] sm:$0xf]
    %v684 = vld [vmem:[#allocation6 + $0x40] sm:$0xf]
    %v685 = vld [vmem:[#allocation6 + $0x44] sm:$0xf]
    %v686 = vld [vmem:[#allocation6 + $0x48] sm:$0xf]
    %v687 = vld [vmem:[#allocation6 + $0x4c] sm:$0xf]
    %v688 = vld [vmem:[#allocation6 + $0x50] sm:$0xf]
    %v689 = vld [vmem:[#allocation6 + $0x54] sm:$0xf]
    %v690 = vld [vmem:[#allocation6 + $0x58] sm:$0xf]
    %v691 = vld [vmem:[#allocation6 + $0x5c] sm:$0xf]
    %v692 = vld [vmem:[#allocation6 + $0x60] sm:$0xf]
    %v693 = vld [vmem:[#allocation6 + $0x64] sm:$0xf]
    %v694 = vld [vmem:[#allocation6 + $0x68] sm:$0xf]
    %v695 = vld [vmem:[#allocation6 + $0x6c] sm:$0xf]
    %v696 = vld [vmem:[#allocation6 + $0x70] sm:$0xf]
    %v697 = vld [vmem:[#allocation6 + $0x74] sm:$0xf]
    %v698 = vld [vmem:[#allocation6 + $0x78] sm:$0xf]
    %v699 = vld [vmem:[#allocation6 + $0x7c] sm:$0xf]
    %v700 = vld [vmem:[%s4] sm:$0x1]
    %v702 = vlaneseq
    %v703 = vshrl.u32 %v702, 7
    %v704 = vsub.s32 0, %v703
    %v705 = vrot.slane %v700, %v704
    %v739 = vunpack.c.l.b16 %v668
    %v740 = vunpack.c.l.b16 %v669
    %v741 = vunpack.c.l.b16 %v670
    %v742 = vunpack.c.l.b16 %v671
    %v743 = vunpack.c.l.b16 %v672
    %v744 = vunpack.c.l.b16 %v673
    %v745 = vunpack.c.l.b16 %v674
    %v746 = vunpack.c.l.b16 %v675
    %v747 = vunpack.c.l.b16 %v676
    %v748 = vunpack.c.l.b16 %v677
    %v749 = vunpack.c.l.b16 %v678
    %v750 = vunpack.c.l.b16 %v679
    %v751 = vunpack.c.l.b16 %v680
    %v752 = vunpack.c.l.b16 %v681
    %v753 = vunpack.c.l.b16 %v682
    %v754 = vunpack.c.l.b16 %v683
    %v755 = vunpack.c.l.b16 %v684
    %v756 = vunpack.c.l.b16 %v685
    %v757 = vunpack.c.l.b16 %v686
    %v758 = vunpack.c.l.b16 %v687
    %v759 = vunpack.c.l.b16 %v688
    %v760 = vunpack.c.l.b16 %v689
    %v761 = vunpack.c.l.b16 %v690
    %v762 = vunpack.c.l.b16 %v691
    %v763 = vunpack.c.l.b16 %v692
    %v764 = vunpack.c.l.b16 %v693
    %v765 = vunpack.c.l.b16 %v694
    %v766 = vunpack.c.l.b16 %v695
    %v767 = vunpack.c.l.b16 %v696
    %v768 = vunpack.c.l.b16 %v697
    %v769 = vunpack.c.l.b16 %v698
    %v770 = vunpack.c.l.b16 %v699
    %v771 = vpack.c.b16 %v740, %v739
    %v772 = vpack.c.b16 %v742, %v741
    %v773 = vpack.c.b16 %v744, %v743
    %v774 = vpack.c.b16 %v746, %v745
    %v775 = vpack.c.b16 %v748, %v747
    %v776 = vpack.c.b16 %v750, %v749
    %v777 = vpack.c.b16 %v752, %v751
    %v778 = vpack.c.b16 %v754, %v753
    %v779 = vpack.c.b16 %v756, %v755
    %v780 = vpack.c.b16 %v758, %v757
    %v781 = vpack.c.b16 %v760, %v759
    %v782 = vpack.c.b16 %v762, %v761
    %v783 = vpack.c.b16 %v764, %v763
    %v784 = vpack.c.b16 %v766, %v765
    %v785 = vpack.c.b16 %v768, %v767
    %v786 = vpack.c.b16 %v770, %v769
    %803 = vmatprep.subr.bf16.mxu0 0
    %804 = vmatpush1.bf16.msra.mxu0 %v771
    %805 = vmatprep.subr.bf16.mxu0 0
    %806 = vmatpush1.bf16.msra.mxu0 %v772
    %807 = vmatprep.subr.bf16.mxu0 0
    %808 = vmatpush1.bf16.msra.mxu0 %v773
    %809 = vmatprep.subr.bf16.mxu0 0
    %810 = vmatpush1.bf16.msra.mxu0 %v774
    %811 = vmatprep.subr.bf16.mxu0 0
    %812 = vmatpush1.bf16.msra.mxu0 %v775
    %813 = vmatprep.subr.bf16.mxu0 0
    %814 = vmatpush1.bf16.msra.mxu0 %v776
    %815 = vmatprep.subr.bf16.mxu0 0
    %816 = vmatpush1.bf16.msra.mxu0 %v777
    %817 = vmatprep.subr.bf16.mxu0 0
    %818 = vmatpush1.bf16.msra.mxu0 %v778
    %819 = vmatprep.subr.bf16.mxu0 0
    %820 = vmatpush1.bf16.msra.mxu0 %v779
    %821 = vmatprep.subr.bf16.mxu0 0
    %822 = vmatpush1.bf16.msra.mxu0 %v780
    %823 = vmatprep.subr.bf16.mxu0 0
    %824 = vmatpush1.bf16.msra.mxu0 %v781
    %825 = vmatprep.subr.bf16.mxu0 0
    %826 = vmatpush1.bf16.msra.mxu0 %v782
    %827 = vmatprep.subr.bf16.mxu0 0
    %828 = vmatpush1.bf16.msra.mxu0 %v783
    %829 = vmatprep.subr.bf16.mxu0 0
    %830 = vmatpush1.bf16.msra.mxu0 %v784
    %831 = vmatprep.subr.bf16.mxu0 0
    %832 = vmatpush1.bf16.msra.mxu0 %v785
    %833 = vmatprep.subr.bf16.mxu0 0
    %834 = vmatpush1.bf16.msra.mxu0 %v786
    %835 = vmatprep.mubr.bf16.mxu0 %v667
    %836 = vmatmul.mubr.bf16.gmra.mrb[0].mxu0 %v666
    %v837 = vpop.f32.mrb[0].mxu0
    %v838 = vadd.f32 %v705, %v837
    %v839 = vpop.f32.mrb[0].mxu0
    %v840 = vpop.f32.mrb[0].mxu0
    %v841 = vpop.f32.mrb[0].mxu0
    %842 = vdwg.mxu0
    %v843 = vmax.f32 %v838, 0.0
    %v844 = vpack.c.bf16 %v843, %v843
    %v845 = vld [vmem:[#allocation7] sm:$0xf]
    %v846 = vld [vmem:[#allocation7 + $0x4] sm:$0xf]
    %v847 = vld [vmem:[#allocation7 + $0x8] sm:$0xf]
    %v848 = vld [vmem:[#allocation7 + $0xc] sm:$0xf]
    %v849 = vld [vmem:[#allocation7 + $0x10] sm:$0xf]
    %v850 = vld [vmem:[#allocation7 + $0x14] sm:$0xf]
    %v851 = vld [vmem:[#allocation7 + $0x18] sm:$0xf]
    %v852 = vld [vmem:[#allocation7 + $0x1c] sm:$0xf]
    %v853 = vld [vmem:[#allocation7 + $0x20] sm:$0xf]
    %v854 = vld [vmem:[#allocation7 + $0x24] sm:$0xf]
    %v855 = vld [vmem:[#allocation7 + $0x28] sm:$0xf]
    %v856 = vld [vmem:[#allocation7 + $0x2c] sm:$0xf]
    %v857 = vld [vmem:[#allocation7 + $0x30] sm:$0xf]
    %v858 = vld [vmem:[#allocation7 + $0x34] sm:$0xf]
    %v859 = vld [vmem:[#allocation7 + $0x38] sm:$0xf]
    %v860 = vld [vmem:[#allocation7 + $0x3c] sm:$0xf]
    %v861 = vld [vmem:[%s6] sm:$0x1]
    %v863 = vlaneseq
    %v864 = vshrl.u32 %v863, 7
    %v865 = vsub.s32 0, %v864
    %v866 = vrot.slane %v861, %v865
    %v884 = vunpack.c.l.b16 %v845
    %v885 = vunpack.c.l.b16 %v846
    %v886 = vunpack.c.l.b16 %v847
    %v887 = vunpack.c.l.b16 %v848
    %v888 = vunpack.c.l.b16 %v849
    %v889 = vunpack.c.l.b16 %v850
    %v890 = vunpack.c.l.b16 %v851
    %v891 = vunpack.c.l.b16 %v852
    %v892 = vunpack.c.l.b16 %v853
    %v893 = vunpack.c.l.b16 %v854
    %v894 = vunpack.c.l.b16 %v855
    %v895 = vunpack.c.l.b16 %v856
    %v896 = vunpack.c.l.b16 %v857
    %v897 = vunpack.c.l.b16 %v858
    %v898 = vunpack.c.l.b16 %v859
    %v899 = vunpack.c.l.b16 %v860
    %v900 = vpack.c.b16 %v885, %v884
    %v901 = vpack.c.b16 %v887, %v886
    %v902 = vpack.c.b16 %v889, %v888
    %v903 = vpack.c.b16 %v891, %v890
    %v904 = vpack.c.b16 %v893, %v892
    %v905 = vpack.c.b16 %v895, %v894
    %v906 = vpack.c.b16 %v897, %v896
    %v907 = vpack.c.b16 %v899, %v898
    %916 = vmatprep.subr.bf16.mxu0 0
    %917 = vmatpush1.bf16.msra.mxu0 %v900
    %918 = vmatprep.subr.bf16.mxu0 0
    %919 = vmatpush1.bf16.msra.mxu0 %v901
    %920 = vmatprep.subr.bf16.mxu0 0
    %921 = vmatpush1.bf16.msra.mxu0 %v902
    %922 = vmatprep.subr.bf16.mxu0 0
    %923 = vmatpush1.bf16.msra.mxu0 %v903
    %924 = vmatprep.subr.bf16.mxu0 0
    %925 = vmatpush1.bf16.msra.mxu0 %v904
    %926 = vmatprep.subr.bf16.mxu0 0
    %927 = vmatpush1.bf16.msra.mxu0 %v905
    %928 = vmatprep.subr.bf16.mxu0 0
    %929 = vmatpush1.bf16.msra.mxu0 %v906
    %930 = vmatprep.subr.bf16.mxu0 0
    %931 = vmatpush1.bf16.msra.mxu0 %v907
    %932 = vmatprep.subr.bf16.mxu0 0
    %933 = vmatpush1.bf16.msra.mxu0 0
    %934 = vmatprep.subr.bf16.mxu0 0
    %935 = vmatpush1.bf16.msra.mxu0 0
    %936 = vmatprep.subr.bf16.mxu0 0
    %937 = vmatpush1.bf16.msra.mxu0 0
    %938 = vmatprep.subr.bf16.mxu0 0
    %939 = vmatpush1.bf16.msra.mxu0 0
    %940 = vmatprep.subr.bf16.mxu0 0
    %941 = vmatpush1.bf16.msra.mxu0 0
    %942 = vmatprep.subr.bf16.mxu0 0
    %943 = vmatpush1.bf16.msra.mxu0 0
    %944 = vmatprep.subr.bf16.mxu0 0
    %945 = vmatpush1.bf16.msra.mxu0 0
    %946 = vmatprep.subr.bf16.mxu0 0
    %947 = vmatpush1.bf16.msra.mxu0 0
    %948 = vmatprep.mubr.bf16.mxu0 0
    %949 = vmatmul.mubr.bf16.gmra.mrb[0].mxu0 %v844
    %v950 = vpop.f32.mrb[0].mxu0
    %v951 = vadd.f32 %v866, %v950
    %v952 = vpop.f32.mrb[0].mxu0
    %v953 = vpop.f32.mrb[0].mxu0
    %v954 = vpop.f32.mrb[0].mxu0
    %955 = vdwg.mxu0
    %v956 = vpack.c.bf16 %v951, %v951
    %957 = vst [vmem:[%s7] sm:$0xf] %v956
    // Predicated region
    $region46: #{har_model_forward.1} parent=1 // pred_check
      _
    $region47: #{har_model_forward.1} parent=1 // pred_check_branch
      %959 = sbr.rel (0) target = $region49
    $region48: #{har_model_forward.1} parent=1 // pred_region
      _
    $region49: #{har_model_forward.1} parent=1 // pred_fallthru
      _
    // Predicated region
    $region50: #{har_model_forward.1} parent=1 // pred_check
      _
    $region51: #{har_model_forward.1} parent=1 // pred_check_branch
      %961 = sbr.rel (0) target = $region53
    $region52: #{har_model_forward.1} parent=1 // pred_region
      _
    $region53: #{har_model_forward.1} parent=1 // pred_fallthru
      _
    %962 = vsyncpa [#allocation3], 1
    %963 = vsyncpa [#allocation5], 1
    %964 = vsyncpa [#allocation8], 1

</llo_original>
